<compile_context>
chip_gen: v7x
topology: tpu7x:2x2x1
jax: 0.10.0
libtpu: 0.0.40
codegen_flags: <defaults>
</compile_context>

<pallas_src>
import math

import jax
import jax.numpy as jnp
from jax import lax
from jax.experimental import pallas as pl
from jax.experimental.pallas import tpu as pltpu


# Scoped-VMEM budget: well above the 16/32 MiB defaults, below v7x's 64 MiB
# physical VMEM, so a single setting is safe on v5e / v6e / v7x.
_VMEM_LIMIT = 48 * 1024 * 1024


def _cparams(*semantics):
    return pltpu.CompilerParams(dimension_semantics=semantics,
                                vmem_limit_bytes=_VMEM_LIMIT)


def _choose_tile(n):
    """Largest dst-node tile (<=256 rows) that divides the padded node count."""
    for tm in (256, 128, 64, 32, 16, 8):
        if tm < n and n % tm == 0:
            return tm
    return n


# ----------------------------------------------------------------------------
# Tiled linear kernel (used for the head-batched Q|K|V|skip projection)
# ----------------------------------------------------------------------------
def _linear_kernel(x_ref, w_ref, b_ref, o_ref):
    o_ref[...] = (jnp.dot(x_ref[...], w_ref[...],
                          preferred_element_type=jnp.float32) + b_ref[...])


def linear(x, w, b, tm):
    N, Fin = x.shape
    Fout = w.shape[1]
    return pl.pallas_call(
        _linear_kernel,
        grid=(N // tm,),
        in_specs=[pl.BlockSpec((tm, Fin), lambda i: (i, 0)),
                  pl.BlockSpec((Fin, Fout), lambda i: (0, 0)),
                  pl.BlockSpec((1, Fout), lambda i: (0, 0))],
        out_specs=pl.BlockSpec((tm, Fout), lambda i: (i, 0)),
        out_shape=jax.ShapeDtypeStruct((N, Fout), jnp.float32),
        compiler_params=_cparams("parallel"),
    )(x, w, b)


# ----------------------------------------------------------------------------
# TransformerConv (beta=True, edge_dim) attention kernel, tiled over dst nodes
# ----------------------------------------------------------------------------
def make_gt_attn_kernel(H, C, De):
    HC = H * C
    scale = 1.0 / math.sqrt(C)          # plain Python float (not captured jnp)

    def kernel(pt_ref, pf_ref, adj_ref, ea_ref, we_ref, wbo_ref, wbx_ref, o_ref):
        pt = pt_ref[...]                     # (TM, 4*HC): rows of the dst tile
        pf = pf_ref[...]                     # (N,  4*HC): all source nodes
        q = pt[:, 0:HC]
        xr = pt[:, 3 * HC:4 * HC]
        k = pf[:, HC:2 * HC]
        v = pf[:, 2 * HC:3 * HC]
        adj = adj_ref[...]                   # (TM, N)
        # hoist the (TM, N) edge-attr slabs once; reused by all heads/loops
        ea = [ea_ref[d] for d in range(De)]
        we = we_ref[...]                     # (H, De, C)

        head_outs = []
        for hh in range(H):
            sl = slice(hh * C, (hh + 1) * C)
            q_h, k_h, v_h = q[:, sl], k[:, sl], v[:, sl]
            we_h = we[hh]                    # (De, C)

            # logits_ij = (q_i . k_j + q_i . (W_e e_ij)) / sqrt(C)
            logits = lax.dot_general(q_h, k_h, (((1,), (1,)), ((), ())),
                                     preferred_element_type=jnp.float32)   # (TM,N)
            qe = lax.dot_general(q_h, we_h, (((1,), (1,)), ((), ())),
                                 preferred_element_type=jnp.float32)       # (TM,De)
            for d in range(De):
                logits = logits + qe[:, d:d + 1] * ea[d]

            # masked softmax over incoming edges of each dst node
            logits = jnp.where(adj > 0.0, logits * scale, -1e30)
            m = jnp.max(logits, axis=-1, keepdims=True)
            p = jnp.exp(logits - m) * adj
            denom = jnp.sum(p, axis=-1, keepdims=True)
            alpha = p * pl.reciprocal(jnp.where(denom > 0.0, denom, 1.0),
                                      approx=True)

            # out_i = sum_j alpha_ij * (v_j + W_e e_ij)
            out_h = jnp.dot(alpha, v_h, preferred_element_type=jnp.float32)  # (TM,C)
            s_cols = [jnp.sum(alpha * ea[d], axis=-1, keepdims=True)
                      for d in range(De)]
            S = jnp.concatenate(s_cols, axis=-1)                             # (TM,De)
            out_h = out_h + jnp.dot(S, we_h, preferred_element_type=jnp.float32)
            head_outs.append(out_h)

        # keep heads in vregs; single lane-dense (TM, HC) result
        out = jnp.concatenate(head_outs, axis=-1)

        # beta = sigmoid(lin_beta([out | x_r | out - x_r])), weights pre-combined
        # host-side; sigmoid via one EUP tanh.
        beta_logit = (jnp.dot(out, wbo_ref[...], preferred_element_type=jnp.float32)
                      + jnp.dot(xr, wbx_ref[...], preferred_element_type=jnp.float32))
        beta = 0.5 * (jnp.tanh(0.5 * beta_logit) + 1.0)
        o_ref[...] = beta * xr + (1.0 - beta) * out

    return kernel


def gt_attention(P, adj, ea, we, wbo, wbx, tm):
    N, HC4 = P.shape
    HC = HC4 // 4
    H, De, C = we.shape
    kernel = make_gt_attn_kernel(H, C, De)
    return pl.pallas_call(
        kernel,
        grid=(N // tm,),
        in_specs=[pl.BlockSpec((tm, HC4), lambda i: (i, 0)),        # q / x_r rows
                  pl.BlockSpec((N, HC4), lambda i: (0, 0)),         # k / v (all src)
                  pl.BlockSpec((tm, N), lambda i: (i, 0)),          # adj tile (stream)
                  pl.BlockSpec((De, tm, N), lambda i: (0, i, 0)),   # ea tile (stream)
                  pl.BlockSpec((H, De, C), lambda i: (0, 0, 0)),
                  pl.BlockSpec((HC, 1), lambda i: (0, 0)),
                  pl.BlockSpec((HC, 1), lambda i: (0, 0))],
        out_specs=pl.BlockSpec((tm, HC), lambda i: (i, 0)),
        out_shape=jax.ShapeDtypeStruct((N, HC), jnp.float32),
        compiler_params=_cparams("parallel"),
    )(P, P, adj, ea, we, wbo, wbx)


# ----------------------------------------------------------------------------
# GINConv(Linear, ReLU, Linear), eps = 0 — tiled over dst nodes
# ----------------------------------------------------------------------------
def _gin_kernel(gt_ref, gf_ref, adj_ref, w1_ref, b1_ref, w2_ref, b2_ref, o_ref):
    z = gt_ref[...] + jnp.dot(adj_ref[...], gf_ref[...],
                              preferred_element_type=jnp.float32)
    z = jnp.maximum(
        jnp.dot(z, w1_ref[...], preferred_element_type=jnp.float32) + b1_ref[...],
        0.0)
    o_ref[...] = jnp.dot(z, w2_ref[...],
                         preferred_element_type=jnp.float32) + b2_ref[...]


def gin_layer(g, adj, w1, b1, w2, b2, tm):
    N, D = g.shape
    Dh = w1.shape[1]
    Do = w2.shape[1]
    return pl.pallas_call(
        _gin_kernel,
        grid=(N // tm,),
        in_specs=[pl.BlockSpec((tm, D), lambda i: (i, 0)),
                  pl.BlockSpec((N, D), lambda i: (0, 0)),
                  pl.BlockSpec((tm, N), lambda i: (i, 0)),
                  pl.BlockSpec((D, Dh), lambda i: (0, 0)),
                  pl.BlockSpec((1, Dh), lambda i: (0, 0)),
                  pl.BlockSpec((Dh, Do), lambda i: (0, 0)),
                  pl.BlockSpec((1, Do), lambda i: (0, 0))],
        out_specs=pl.BlockSpec((tm, Do), lambda i: (i, 0)),
        out_shape=jax.ShapeDtypeStruct((N, Do), jnp.float32),
        compiler_params=_cparams("parallel"),
    )(g, g, adj, w1, b1, w2, b2)


# ----------------------------------------------------------------------------
# global mean/add pooling + MLP readout (tiny: one fused call)
# ----------------------------------------------------------------------------
def _readout_kernel(gt_ref, gin_ref, pool_ref, inv_ref,
                    w1gt_ref, w1gin_ref, b1_ref, w2_ref, b2_ref, o_ref):
    pool = pool_ref[...]                                            # (G, N) one-hot
    gt_pool = jnp.dot(pool, gt_ref[...],
                      preferred_element_type=jnp.float32) * inv_ref[...]   # mean
    gin_pool = jnp.dot(pool, gin_ref[...],
                       preferred_element_type=jnp.float32)                 # add
    z = (jnp.dot(gt_pool, w1gt_ref[...], preferred_element_type=jnp.float32)
         + jnp.dot(gin_pool, w1gin_ref[...], preferred_element_type=jnp.float32)
         + b1_ref[...])
    z = jnp.maximum(z, 0.0)
    o_ref[...] = jnp.dot(z, w2_ref[...],
                         preferred_element_type=jnp.float32) + b2_ref[...]


def readout(gt_embed, gin_embed, pool, invcnt, ro):
    G = pool.shape[0]
    T = ro["w2"].shape[1]
    args = (gt_embed, gin_embed, pool, invcnt,
            ro["w1_gt"], ro["w1_gin"], ro["b1"], ro["w2"], ro["b2"])
    return pl.pallas_call(
        _readout_kernel,
        grid=(1,),
        in_specs=[pl.BlockSpec(a.shape, lambda i: (0, 0)) for a in args],  # all rank-2
        out_specs=pl.BlockSpec((G, T), lambda i: (0, 0)),
        out_shape=jax.ShapeDtypeStruct((G, T), jnp.float32),
        compiler_params=_cparams("arbitrary"),
    )(*args)


# ----------------------------------------------------------------------------
# Full forward pass
# ----------------------------------------------------------------------------
def forward(params, x, adj, ea, pool, invcnt, tm):
    h = x
    for lp in params["gt"]:
        # head-batched lane-dense projection P = [q | k | v | x_r]
        P = linear(h, lp["w_proj"], lp["b_proj"], tm)               # (N, 4*H*C)
        h = gt_attention(P, adj, ea, lp["we"], lp["wbo"], lp["wbx"], tm)
    gt_embed = h                                                    # (N, H*C)

    g = gt_embed
    for lp in params["gin"]:
        g = gin_layer(g, adj, lp["w1"], lp["b1"], lp["w2"], lp["b2"], tm)

    return readout(gt_embed, g, pool, invcnt, params["readout"])


# ----------------------------------------------------------------------------
# Deterministic parameter init (PyTorch Linear-style uniform bounds)
# ----------------------------------------------------------------------------
def _linear_init(key, fan_in, fan_out, bias=True):
    kw, kb = jax.random.split(key)
    bound = 1.0 / math.sqrt(fan_in)
    w = jax.random.uniform(kw, (fan_out, fan_in), jnp.float32, -bound, bound)
    if bias:
        b = jax.random.uniform(kb, (fan_out,), jnp.float32, -bound, bound)
        return w, b
    return w, None


def _init_gt_layer(key, in_dim, hidden, heads, edge_dim):
    C, H = hidden, heads
    HC = H * C
    ks = jax.random.split(key, 6)
    wq, bq = _linear_init(ks[0], in_dim, HC)
    wk, bk = _linear_init(ks[1], in_dim, HC)
    wv, bv = _linear_init(ks[2], in_dim, HC)
    we, _ = _linear_init(ks[3], edge_dim, HC, bias=False)
    wskip, bskip = _linear_init(ks[4], in_dim, HC)
    wbeta, _ = _linear_init(ks[5], 3 * HC, 1, bias=False)          # (1, 3*H*C)

    # single head-batched projection matrix: P = h @ w_proj + b_proj
    w_proj = jnp.concatenate([wq.T, wk.T, wv.T, wskip.T], axis=1)   # (in_dim, 4*HC)
    b_proj = jnp.concatenate([bq, bk, bv, bskip]).reshape(1, 4 * HC)

    # lin_beta input is cat([out, x_r, out - x_r]); pre-combine:
    #   beta_logit = out @ (w_out + w_diff) + x_r @ (w_xr - w_diff)
    wb = wbeta.reshape(3, HC)
    wbo = (wb[0] + wb[2]).reshape(HC, 1)
    wbx = (wb[1] - wb[2]).reshape(HC, 1)

    return dict(
        w_proj=w_proj, b_proj=b_proj,
        we=jnp.transpose(we.reshape(H, C, edge_dim), (0, 2, 1)),    # (H, De, C)
        wbo=wbo, wbx=wbx)


def _init_gin_layer(key, in_dim, hidden):
    k1, k2 = jax.random.split(key)
    w1, b1 = _linear_init(k1, in_dim, hidden)
    w2, b2 = _linear_init(k2, hidden, hidden)
    return dict(w1=w1.T, b1=b1.reshape(1, -1), w2=w2.T, b2=b2.reshape(1, -1))


def _init_readout(key, hidden, heads, num_targets):
    k1, k2 = jax.random.split(key)
    HC = hidden * heads
    w1, b1 = _linear_init(k1, hidden + HC, hidden)   # concat order: [gt (H*C) | gin (C)]
    w2, b2 = _linear_init(k2, hidden, num_targets)
    return dict(w1_gt=w1[:, :HC].T, w1_gin=w1[:, HC:].T,
                b1=b1.reshape(1, -1), w2=w2.T, b2=b2.reshape(1, -1))


def init_params(key, num_features, num_targets, hidden, heads, edge_dim,
                num_layers_gin, num_layers_gt):
    keys = jax.random.split(key, num_layers_gt + num_layers_gin + 1)
    gt = []
    for l in range(num_layers_gt):
        in_dim = num_features if l == 0 else hidden * heads
        gt.append(_init_gt_layer(keys[l], in_dim, hidden, heads, edge_dim))
    gin = []
    for l in range(num_layers_gin):
        in_dim = hidden * heads if l == 0 else hidden
        gin.append(_init_gin_layer(keys[num_layers_gt + l], in_dim, hidden))
    ro = _init_readout(keys[-1], hidden, heads, num_targets)
    return dict(gt=gt, gin=gin, readout=ro)


# ----------------------------------------------------------------------------
# Demo
# ----------------------------------------------------------------------------
if __name__ == "__main__":
    num_features, num_targets = 8, 3
    hidden, heads = 8, 2
    edge_dim = 4
    num_layers_gt, num_layers_gin = 2, 2
    N, G = 16, 2                                     # 16 nodes, 2 graphs of 8 nodes

    key = jax.random.PRNGKey(0)
    kx, kea, kp = jax.random.split(key, 3)

    # deterministic small graph: bidirectional ring + two chords per graph
    src, dst = [], []
    n_per = N // G
    for gidx in range(G):
        base = gidx * n_per
        for i in range(n_per):
            src += [base + i, base + (i + 1) % n_per]
            dst += [base + (i + 1) % n_per, base + i]
        src += [base + 0, base + 2]
        dst += [base + 4, base + 6]
    edge_index = jnp.array([src, dst], dtype=jnp.int32)     # (2, 36)
    E = edge_index.shape[1]

    x = jax.random.normal(kx, (N, num_features), jnp.float32)
    edge_attr = jax.random.normal(kea, (E, edge_dim), jnp.float32)
    batch = jnp.repeat(jnp.arange(G, dtype=jnp.int32), n_per)

    # ---- host-side densification / padding (plain-JAX glue) ----
    Np = ((N + 7) // 8) * 8                                  # pad node axis to sublanes
    adj = (jnp.zeros((Np, Np), jnp.float32)
             .at[edge_index[1], edge_index[0]].set(1.0))     # adj[dst, src]
    ea = jnp.transpose(
        jnp.zeros((Np, Np, edge_dim), jnp.float32)
           .at[edge_index[1], edge_index[0]].set(edge_attr),
        (2, 0, 1))                                           # (edge_dim, dst, src)
    xp = jnp.zeros((Np, num_features), jnp.float32).at[:N].set(x)
    pool = (jnp.zeros((G, Np), jnp.float32)
              .at[batch, jnp.arange(N)].set(1.0))            # (G, Np) one-hot rows
    counts = jnp.sum(pool, axis=1, keepdims=True)
    invcnt = 1.0 / jnp.maximum(counts, 1.0)                  # (G, 1) for mean pool

    params = init_params(kp, num_features, num_targets, hidden, heads,
                         edge_dim, num_layers_gin, num_layers_gt)

    tm = _choose_tile(Np)                                    # dst-node tile size
    out = forward(params, xp, adj, ea, pool, invcnt, tm)
    out = jax.block_until_ready(out)

    assert out.shape == (G, num_targets)
    assert bool(jnp.all(jnp.isfinite(out)))
    print("KERNEL_OK")
</pallas_src>

<mosaic_0001>
module attributes {stable_mosaic.version = 11 : i64} {
  func.func @_linear_kernel(%arg0: i32, %arg1: memref<8x8xf32, #tpu.memory_space<vmem>>, %arg2: memref<8x64xf32, #tpu.memory_space<vmem>>, %arg3: memref<1x64xf32, #tpu.memory_space<vmem>>, %arg4: memref<8x64xf32, #tpu.memory_space<vmem>>) attributes {dimension_semantics = [#tpu.dimension_semantics<parallel>], iteration_bounds = array<i64: 2>, scalar_prefetch = 0 : i64, scratch_operands = 0 : i64, tpu.core_type = #tpu.core_type<tc>, window_params = [{transform_indices = @transform_0, window_bounds = array<i64: 8, 8>}, {pipeline_mode = #tpu.pipeline_mode<synchronous>, transform_indices = @transform_1, window_bounds = array<i64: 8, 64>}, {pipeline_mode = #tpu.pipeline_mode<synchronous>, transform_indices = @transform_2, window_bounds = array<i64: 1, 64>}, {transform_indices = @transform_3, window_bounds = array<i64: 8, 64>}]} {
    %c0 = arith.constant 0 : index
    %c0_0 = arith.constant 0 : index
    %0 = vector.load %arg1[%c0, %c0_0] : memref<8x8xf32, #tpu.memory_space<vmem>>, vector<8x8xf32>
    %c0_1 = arith.constant 0 : index
    %c0_2 = arith.constant 0 : index
    %1 = vector.load %arg2[%c0_1, %c0_2] : memref<8x64xf32, #tpu.memory_space<vmem>>, vector<8x64xf32>
    %cst = arith.constant dense<0.000000e+00> : vector<8x64xf32>
    %2 = tpu.matmul %0, %1, %cst {dimension_numbers = #tpu.dot_dimension_numbers<[1], [0], [0], [1], [0, 0, 1, 1], [], []>} : vector<8x8xf32>, vector<8x64xf32>, vector<8x64xf32> -> vector<8x64xf32>
    %c0_3 = arith.constant 0 : index
    %c0_4 = arith.constant 0 : index
    %3 = vector.load %arg3[%c0_3, %c0_4] : memref<1x64xf32, #tpu.memory_space<vmem>>, vector<1x64xf32>
    %4 = vector.broadcast %3 : vector<1x64xf32> to vector<8x64xf32>
    %5 = arith.addf %2, %4 : vector<8x64xf32>
    %c0_5 = arith.constant 0 : index
    %c0_6 = arith.constant 0 : index
    %6 = vector.load %arg4[%c0_5, %c0_6] : memref<8x64xf32, #tpu.memory_space<vmem>>, vector<8x64xf32>
    tpu.vector_store %arg4[%c0_5, %c0_6], %5 {strides = array<i32>} : memref<8x64xf32, #tpu.memory_space<vmem>>, vector<8x64xf32>,
    return
  }
  func.func @transform_0(%arg0: i32) -> (i32, i32) {
    %c0_i32 = arith.constant 0 : i32
    %c0_i32_0 = arith.constant 0 : i32
    return %arg0, %c0_i32 : i32, i32
  }
  func.func @transform_1(%arg0: i32) -> (i32, i32) {
    %c0_i32 = arith.constant 0 : i32
    %c0_i32_0 = arith.constant 0 : i32
    %c0_i32_1 = arith.constant 0 : i32
    return %c0_i32, %c0_i32_0 : i32, i32
  }
  func.func @transform_2(%arg0: i32) -> (i32, i32) {
    %c0_i32 = arith.constant 0 : i32
    %c0_i32_0 = arith.constant 0 : i32
    %c0_i32_1 = arith.constant 0 : i32
    return %c0_i32, %c0_i32_0 : i32, i32
  }
  func.func @transform_3(%arg0: i32) -> (i32, i32) {
    %c0_i32 = arith.constant 0 : i32
    %c0_i32_0 = arith.constant 0 : i32
    return %arg0, %c0_i32 : i32, i32
  }
}

</mosaic_0001>

<llo_original>
// kernel: tpu_custom_call.1
$region0: #{tpu_custom_call.1}
  #allocation0 [shape = 'u32[]', space=smem, size = 0x4, offset = 0x4, fixed_abs, tag = 'smem constant byte address 0x4 - core index']
  #allocation1 [shape = 'u32[144,128]{1,0:T(1,128)}', space=vmem, size = 0x12000, scoped, tag = 'internal scratch']
  %s0 = inlined_call_operand.vmem [shape: f32[16,8], index: 0, kind: input, shape index: {}]
  %s1 = inlined_call_operand.vmem [shape: f32[8,64], index: 1, kind: input, shape index: {}]
  %s2 = inlined_call_operand.vmem [shape: f32[1,64], index: 2, kind: input, shape index: {}]
  %s3 = inlined_call_operand.hbm [shape: f32[16,64], index: 3, kind: output, shape index: {}]
  %s4 = sld [smem:[#allocation0]]
  $region45: #{tpu_custom_call.1} parent=0
    _
  %s6 = ssub.s32 1, %s4
  %s7 = scalar_select 0, %s6, %s4
  $region1: #{tpu_custom_call.1} parent=0
    #allocation2 [shape = 'u8[8192]{0}', space=vmem, size = 0x2000, scoped, tag = 'output window, operand 0']
    #allocation3 [shape = 's32[2]{0}', space=sflag, size = 0x8, scoped, tag = 'scoped memory for tpu_custom_call.1']
    %8 = vsyncpa [#allocation3], 0
    %s9 = scalar_lea.sflag [#allocation3], 1
    %10 = vsyncpa %s9, 0
    loop: start=0, step=1, limit=4
    $region2: #{tpu_custom_call.1} parent=1 // loop_pre_header
      _
    $region3: #{tpu_custom_call.1} parent=1 // loop_header
      %s12 = sphi 0, %s16
      %p13 = scmp.ge.s32.totalorder %s12, 4
      %s22 = sphi 0, %s24
      %s25 = sphi 0, %s22
      %s26 = sphi 0, %s25
      %s42 = sphi 0, %s26
      %s46 = sphi 0, %s46
      %s48 = sphi 0, %s46
      %s49 = sphi 0, %s48
      %s63 = sphi 0, %s49
      %s67 = sphi 0, %s67
      %s69 = sphi 0, %s67
      %s70 = sphi 0, %s69
      %s84 = sphi 0, %s70
      %s90 = sphi 0, %s92
      %s93 = sphi 0, %s90
      %s94 = sphi 0, %s93
      %s110 = sphi 0, %s94
    $region4: #{tpu_custom_call.1} parent=1 // loop_header_branch
      %15 = sbr.rel (%p13) target = $region8
    $region5: #{tpu_custom_call.1} parent=1 // loop_body
      %s17 = ssub.s32 %s12, 1
      %s18 = ssub.s32 %s12, 2
      %s19 = sadd.s32 %s12, 1
      %s20 = ssub.s32 %s12, %s19
      %p21 = scmp.eq.s32.totalorder %s20, 0
      %s23 = sadd.s32 %s22, 1
      %s24 = scalar_select %p21, %s22, %s23
      %p27 = pneg %p21
      %p28 = scmp.eq.s32.totalorder %s12, 1
      %p29 = por %p27, %p28
      %p30 = scmp.ne.s32.totalorder %s22, %s25
      %p31 = scmp.eq.s32.totalorder %s12, 0
      %p32 = por %p30, %p31
      %p33 = scmp.ne.s32.totalorder %s22, %s25
      %p34 = scmp.eq.s32.totalorder %s17, 1
      %p35 = por %p33, %p34
      %p36 = scmp.ne.s32.totalorder %s25, %s26
      %p37 = scmp.eq.s32.totalorder %s17, 0
      %p38 = por %p36, %p37
      %p39 = scmp.ne.s32.totalorder %s25, %s26
      %p40 = scmp.eq.s32.totalorder %s18, 1
      %p41 = por %p39, %p40
      %p43 = scmp.ne.s32.totalorder %s26, %s42
      %p44 = scmp.eq.s32.totalorder %s18, 0
      %p45 = por %p43, %p44
      %s47 = sadd.s32 %s46, 1
      %p50 = scmp.eq.s32.totalorder %s12, 1
      %p51 = scmp.ne.s32.totalorder %s46, %s48
      %p52 = scmp.eq.s32.totalorder %s12, 0
      %p53 = por %p51, %p52
      %p54 = scmp.ne.s32.totalorder %s46, %s48
      %p55 = scmp.eq.s32.totalorder %s17, 1
      %p56 = por %p54, %p55
      %p57 = scmp.ne.s32.totalorder %s48, %s49
      %p58 = scmp.eq.s32.totalorder %s17, 0
      %p59 = por %p57, %p58
      %p60 = scmp.ne.s32.totalorder %s48, %s49
      %p61 = scmp.eq.s32.totalorder %s18, 1
      %p62 = por %p60, %p61
      %p64 = scmp.ne.s32.totalorder %s49, %s63
      %p65 = scmp.eq.s32.totalorder %s18, 0
      %p66 = por %p64, %p65
      %s68 = sadd.s32 %s67, 1
      %p71 = scmp.eq.s32.totalorder %s12, 1
      %p72 = scmp.ne.s32.totalorder %s67, %s69
      %p73 = scmp.eq.s32.totalorder %s12, 0
      %p74 = por %p72, %p73
      %p75 = scmp.ne.s32.totalorder %s67, %s69
      %p76 = scmp.eq.s32.totalorder %s17, 1
      %p77 = por %p75, %p76
      %p78 = scmp.ne.s32.totalorder %s69, %s70
      %p79 = scmp.eq.s32.totalorder %s17, 0
      %p80 = por %p78, %p79
      %p81 = scmp.ne.s32.totalorder %s69, %s70
      %p82 = scmp.eq.s32.totalorder %s18, 1
      %p83 = por %p81, %p82
      %p85 = scmp.ne.s32.totalorder %s70, %s84
      %p86 = scmp.eq.s32.totalorder %s18, 0
      %p87 = por %p85, %p86
      %s88 = ssub.s32 %s12, %s19
      %p89 = scmp.eq.s32.totalorder %s88, 0
      %s91 = sadd.s32 %s90, 1
      %s92 = scalar_select %p89, %s90, %s91
      %p95 = pneg %p89
      %p96 = scmp.eq.s32.totalorder %s12, 1
      %p97 = por %p95, %p96
      %p98 = scmp.ne.s32.totalorder %s90, %s93
      %p99 = scmp.eq.s32.totalorder %s12, 0
      %p100 = por %p98, %p99
      %p101 = scmp.ne.s32.totalorder %s90, %s93
      %p102 = scmp.eq.s32.totalorder %s17, 1
      %p103 = por %p101, %p102
      %p104 = scmp.ne.s32.totalorder %s93, %s94
      %p105 = scmp.eq.s32.totalorder %s17, 0
      %p106 = por %p104, %p105
      %p107 = scmp.ne.s32.totalorder %s93, %s94
      %p108 = scmp.eq.s32.totalorder %s18, 1
      %p109 = por %p107, %p108
      %p111 = scmp.ne.s32.totalorder %s94, %s110
      %p112 = scmp.eq.s32.totalorder %s18, 0
      %p113 = por %p111, %p112
      %p114 = scmp.le.s32.totalorder 1, %s12
      %p115 = scmp.lt.s32.totalorder %s12, 3
      %p116 = pnand %p114, %p115
      %p117 = pneg %p116
      // Predicated region
      $region9: #{tpu_custom_call.1} parent=5 // pred_check
        _
      $region10: #{tpu_custom_call.1} parent=5 // pred_check_branch
        %119 = sbr.rel (%p116) target = $region12
      $region11: #{tpu_custom_call.1} parent=5 // pred_region
        %s120 = ssub.s32 %s12, 1
        // Predicated region
        $region13: #{tpu_custom_call.1} parent=11 // pred_check
          %p121 = pneg %p59
        $region14: #{tpu_custom_call.1} parent=11 // pred_check_branch
          %123 = sbr.rel (%p121) target = $region16
        $region15: #{tpu_custom_call.1} parent=11 // pred_region
          _
        $region16: #{tpu_custom_call.1} parent=11 // pred_fallthru
          _
        // Predicated region
        $region17: #{tpu_custom_call.1} parent=11 // pred_check
          %p124 = pneg %p80
        $region18: #{tpu_custom_call.1} parent=11 // pred_check_branch
          %126 = sbr.rel (%p124) target = $region20
        $region19: #{tpu_custom_call.1} parent=11 // pred_region
          _
        $region20: #{tpu_custom_call.1} parent=11 // pred_fallthru
          _
      $region12: #{tpu_custom_call.1} parent=5 // pred_fallthru
        _
      %p127 = scmp.lt.s32.totalorder %s12, 2
      // Predicated region
      $region21: #{tpu_custom_call.1} parent=5 // pred_check
        %p128 = pneg %p127
      $region22: #{tpu_custom_call.1} parent=5 // pred_check_branch
        %130 = sbr.rel (%p128) target = $region24
      $region23: #{tpu_custom_call.1} parent=5 // pred_region
        // Predicated region
        $region25: #{tpu_custom_call.1} parent=23 // pred_check
          %p131 = pneg %p32
        $region26: #{tpu_custom_call.1} parent=23 // pred_check_branch
          %133 = sbr.rel (%p131) target = $region28
        $region27: #{tpu_custom_call.1} parent=23 // pred_region
          %p134 = scmp.lt.s32.totalorder %s12, 1
          %s135 = scalar_select %p134, %s12, 1
          %s136 = smul.addr %s135, 8
          %s137 = scalar_lea.vmem %s0, %s136
        $region28: #{tpu_custom_call.1} parent=23 // pred_fallthru
          _
      $region24: #{tpu_custom_call.1} parent=5 // pred_fallthru
        _
      %p138 = scmp.le.s32.totalorder 1, %s12
      %p139 = scmp.lt.s32.totalorder %s12, 3
      %p140 = pnand %p138, %p139
      %p141 = pneg %p140
      // Predicated region
      $region29: #{tpu_custom_call.1} parent=5 // pred_check
        _
      $region30: #{tpu_custom_call.1} parent=5 // pred_check_branch
        %143 = sbr.rel (%p140) target = $region32
      $region31: #{tpu_custom_call.1} parent=5 // pred_region
        %s144 = ssub.s32 %s12, 1
        %p145 = scmp.lt.s32.totalorder %s17, 1
        %s146 = scalar_select %p145, %s17, 1
        %s147 = smul.addr %s146, 8
        %s148 = scalar_lea.vmem %s0, %s147
        %p149 = pneg %p38
        %p150 = pneg %p35
        %p151 = pneg %p59
        %p152 = pneg %p56
        %p153 = pneg %p80
        %p154 = pneg %p77
        %p155 = pneg %p106
        %p156 = pneg %p103
        %s157 = sand.u32 %s93, 1
        %s158 = scalar_lea.sflag [#allocation3], %s157
        %s159 = sand.u32 %s93, 1
        %s160 = smul.addr %s159, 8
        %s161 = scalar_lea.vmem [#allocation2], %s160
        %p162 = scmp.lt.s32.totalorder %s17, 1
        %s163 = scalar_select %p162, %s17, 1
        %s164 = smul.addr %s163, 8
        %s165 = scalar_lea.vmem %s0, %s164
        %v166 = vld [vmem:[%s165] sm:$0xff]
        %v167 = vld [vmem:[%s1] sm:$0xff]
        %v168 = vld [vmem:[%s2] sm:$0x1]
        %v170 = vlaneseq
        %v171 = vshrl.u32 %v170, 7
        %v172 = vsub.s32 0, %v171
        %v173 = vrot.slane %v168, %v172
        %vm175 = vcmask 64512
        %v177 = vsel %vm175, %v166, 0
        %179 = vmatprep.subr.mxu0 0.0
        %180 = vmatpush1.msra.mxu0 %v167
        %181 = vmatprep.subr.mxu0 0.0
        %182 = vmatpush1.msra.mxu0 0.0
        %183 = vmatprep.subr.mxu0 0.0
        %184 = vmatpush1.msra.mxu0 0.0
        %185 = vmatprep.subr.mxu0 0.0
        %186 = vmatpush1.msra.mxu0 0.0
        %187 = vmatprep.subr.mxu0 0.0
        %188 = vmatpush1.msra.mxu0 0.0
        %189 = vmatprep.subr.mxu0 0.0
        %190 = vmatpush1.msra.mxu0 0.0
        %191 = vmatprep.subr.mxu0 0.0
        %192 = vmatpush1.msra.mxu0 0.0
        %193 = vmatprep.subr.mxu0 0.0
        %194 = vmatpush1.msra.mxu0 0.0
        %195 = vmatprep.subr.mxu0 0.0
        %196 = vmatpush1.msra.mxu0 0.0
        %197 = vmatprep.subr.mxu0 0.0
        %198 = vmatpush1.msra.mxu0 0.0
        %199 = vmatprep.subr.mxu0 0.0
        %200 = vmatpush1.msra.mxu0 0.0
        %201 = vmatprep.subr.mxu0 0.0
        %202 = vmatpush1.msra.mxu0 0.0
        %203 = vmatprep.subr.mxu0 0.0
        %204 = vmatpush1.msra.mxu0 0.0
        %205 = vmatprep.subr.mxu0 0.0
        %206 = vmatpush1.msra.mxu0 0.0
        %207 = vmatprep.subr.mxu0 0.0
        %208 = vmatpush1.msra.mxu0 0.0
        %209 = vmatprep.subr.mxu0 0.0
        %210 = vmatpush1.msra.mxu0 0.0
        %211 = vmatprep.subr.mxu0 0.0
        %212 = vmatpush1.msra.mxu0 0.0
        %213 = vmatprep.subr.mxu0 0.0
        %214 = vmatpush1.msra.mxu0 0.0
        %215 = vmatprep.subr.mxu0 0.0
        %216 = vmatpush1.msra.mxu0 0.0
        %217 = vmatprep.subr.mxu0 0.0
        %218 = vmatpush1.msra.mxu0 0.0
        %219 = vmatprep.subr.mxu0 0.0
        %220 = vmatpush1.msra.mxu0 0.0
        %221 = vmatprep.subr.mxu0 0.0
        %222 = vmatpush1.msra.mxu0 0.0
        %223 = vmatprep.subr.mxu0 0.0
        %224 = vmatpush1.msra.mxu0 0.0
        %225 = vmatprep.subr.mxu0 0.0
        %226 = vmatpush1.msra.mxu0 0.0
        %227 = vmatprep.subr.mxu0 0.0
        %228 = vmatpush1.msra.mxu0 0.0
        %229 = vmatprep.subr.mxu0 0.0
        %230 = vmatpush1.msra.mxu0 0.0
        %231 = vmatprep.subr.mxu0 0.0
        %232 = vmatpush1.msra.mxu0 0.0
        %233 = vmatprep.subr.mxu0 0.0
        %234 = vmatpush1.msra.mxu0 0.0
        %235 = vmatprep.subr.mxu0 0.0
        %236 = vmatpush1.msra.mxu0 0.0
        %237 = vmatprep.subr.mxu0 0.0
        %238 = vmatpush1.msra.mxu0 0.0
        %239 = vmatprep.subr.mxu0 0.0
        %240 = vmatpush1.msra.mxu0 0.0
        %241 = vmatprep.subr.mxu0 0.0
        %242 = vmatpush1.msra.mxu0 0.0
        %243 = vmatprep.mubr.f32.mxu0 0.0
        %244 = vmatmul.mubr.f32.gmra.mrb[0].mxu0 %v177
        %v245 = vpop.f32.mrb[0].mxu0
        %v246 = vadd.f32 %v173, %v245
        %v247 = vpop.f32.mrb[0].mxu0
        %248 = vdwg.mxu0
        %vm249 = vcmask 523264
        %250 = vst.msk [vmem:[%s161] sm:$0xff] %vm249, %v246
        %s251 = sand.u32 %s93, 1
        %s252 = scalar_lea.sflag [#allocation3], %s251
        %s253 = sand.u32 %s93, 1
        %s254 = smul.addr %s253, 8
        %s255 = scalar_lea.vmem [#allocation2], %s254
        // Predicated region
        $region33: #{tpu_custom_call.1} parent=31 // pred_check
          %p256 = pneg %p103
        $region34: #{tpu_custom_call.1} parent=31 // pred_check_branch
          %258 = sbr.rel (%p256) target = $region36
        $region35: #{tpu_custom_call.1} parent=31 // pred_region
          %s260 = ssub.s32 128, 128
          %261 = vsyncadd %s252, %s260
          %s262 = smul.addr %s17, 128
          %s263 = scalar_lea.hbm %s3, %s262
          %s265 = sshll.u32 %s255, 4
          %s266 = int_to_ptr.vmem [resolvable:$true] %s265
          %268 = dma.vmem_to_hbm [thread:$0]  %s266, 128, %s263, %s252
        $region36: #{tpu_custom_call.1} parent=31 // pred_fallthru
          _
      $region32: #{tpu_custom_call.1} parent=5 // pred_fallthru
        _
      %p269 = scmp.le.s32.totalorder 2, %s12
      // Predicated region
      $region37: #{tpu_custom_call.1} parent=5 // pred_check
        %p270 = pneg %p269
      $region38: #{tpu_custom_call.1} parent=5 // pred_check_branch
        %272 = sbr.rel (%p270) target = $region40
      $region39: #{tpu_custom_call.1} parent=5 // pred_region
        %s273 = ssub.s32 %s12, 2
        // Predicated region
        $region41: #{tpu_custom_call.1} parent=39 // pred_check
          %p274 = pneg %p109
        $region42: #{tpu_custom_call.1} parent=39 // pred_check_branch
          %276 = sbr.rel (%p274) target = $region44
        $region43: #{tpu_custom_call.1} parent=39 // pred_region
          %s277 = sand.u32 %s94, 1
          %s278 = scalar_lea.sflag [#allocation3], %s277
          %s279 = sand.u32 %s94, 1
          %s280 = smul.addr %s279, 8
          %s281 = scalar_lea.vmem [#allocation2], %s280
          %282 = dma.done %s278, 128
        $region44: #{tpu_custom_call.1} parent=39 // pred_fallthru
          _
      $region40: #{tpu_custom_call.1} parent=5 // pred_fallthru
        _
    $region6: #{tpu_custom_call.1} parent=1 // loop_footer
      %s16 = sadd.s32 1, %s12
    $region7: #{tpu_custom_call.1} parent=1 // loop_footer_branch
      %11 = sbr.rel target = $region3
    $region8: #{tpu_custom_call.1} parent=1 // loop_exit
      _
    %283 = vsyncpa [#allocation3], 1
    %s284 = scalar_lea.sflag [#allocation3], 1
    %285 = vsyncpa %s284, 1

</llo_original>
